<compile_context>
chip_gen: v7x
topology: tpu7x:2x2x1
jax: 0.10.0
libtpu: 0.0.40
codegen_flags: <defaults>
</compile_context>

<pallas_src>
import jax
import jax.numpy as jnp
from jax.experimental import pallas as pl
from jax.experimental.pallas import tpu as pltpu


_CAP_BYTES = 8 * 1024 * 1024  # target input bytes per grid step


# ---------------------------------------------------------------------------
# Small helpers (wrapper side, plain Python).
# ---------------------------------------------------------------------------
def _pick_tile(extent, bytes_per_unit, override):
    """Largest lane-dense tile (multiple of 128, or the full extent)."""
    if override is not None:
        if extent <= override:
            return extent
        assert override % 128 == 0, "tile override must be a multiple of 128"
        return override
    cap = max(128, (_CAP_BYTES // bytes_per_unit) // 128 * 128)
    return extent if extent <= cap else cap


def _grid_split(n_tiles):
    """Split the reduction into two halves (v7x dual-TC) when cleanly possible."""
    if n_tiles >= 2 and n_tiles % 2 == 0:
        return 2, n_tiles // 2
    return 1, n_tiles


def _compiler_params(tile_in_bytes):
    # double-buffered inputs + small outputs + margin, clamped to a range that
    # is safe on v5e/v6e (128 MiB VMEM) and v7x (64 MiB VMEM).
    vmem = int(2 * tile_in_bytes + (4 << 20))
    vmem = min(max(vmem, 8 << 20), 40 << 20)
    return pltpu.CompilerParams(
        dimension_semantics=("parallel", "parallel", "arbitrary"),
        vmem_limit_bytes=vmem,
    )


# ---------------------------------------------------------------------------
# Kernel 1: masked feature moments (streaming reduction over spatial tiles).
#   with_kink=True  ('mse' path, single pass):
#       S_oc[c], cnt_oc, S_kk[c], SS_kk[c], cnt_kk
#   with_kink=False ('cos_mse' pass 1): S_oc[c], cnt_oc only (no kink mask read)
# ---------------------------------------------------------------------------
def _make_moment_kernel(hw, tw, tph, with_kink):
    ragged = (hw % tw) != 0

    def kernel(*refs):
        if with_kink:
            (f_ref, oc_ref, kk_ref,
             s_oc_ref, cnt_oc_ref, s_kk_ref, ss_kk_ref, cnt_kk_ref) = refs
        else:
            f_ref, oc_ref, s_oc_ref, cnt_oc_ref = refs

        @pl.when(pl.program_id(2) == 0)
        def _():
            s_oc_ref[...] = jnp.zeros_like(s_oc_ref)
            cnt_oc_ref[...] = jnp.zeros_like(cnt_oc_ref)
            if with_kink:
                s_kk_ref[...] = jnp.zeros_like(s_kk_ref)
                ss_kk_ref[...] = jnp.zeros_like(ss_kk_ref)
                cnt_kk_ref[...] = jnp.zeros_like(cnt_kk_ref)

        f = f_ref[...].astype(jnp.float32)           # (C, TW)
        m_oc = oc_ref[...] == 2                      # (1, TW) bool
        if with_kink:
            m_kk = kk_ref[...] == 1                  # (1, TW) bool

        if ragged:  # traced only when HW % TW != 0
            g = pl.program_id(1) * tph + pl.program_id(2)   # global tile index
            lane = jax.lax.broadcasted_iota(jnp.int32, m_oc.shape, 1)
            valid = (g * tw + lane) < hw
            m_oc = jnp.logical_and(m_oc, valid)
            if with_kink:
                m_kk = jnp.logical_and(m_kk, valid)

        f_oc = jnp.where(m_oc, f, 0.0)
        s_oc_ref[...] += jnp.sum(f_oc, axis=1, keepdims=True)
        cnt_oc_ref[...] += jnp.sum(m_oc.astype(jnp.float32), axis=1, keepdims=True)
        if with_kink:
            f_kk = jnp.where(m_kk, f, 0.0)
            s_kk_ref[...] += jnp.sum(f_kk, axis=1, keepdims=True)
            ss_kk_ref[...] += jnp.sum(f_kk * f_kk, axis=1, keepdims=True)
            cnt_kk_ref[...] += jnp.sum(m_kk.astype(jnp.float32), axis=1, keepdims=True)

    return kernel


def _moment_pass(f, oc3, kk3, B, C, HW, tile_spatial, with_kink):
    bpp = f.dtype.itemsize * C + oc3.dtype.itemsize
    if with_kink:
        bpp += kk3.dtype.itemsize
    tw = _pick_tile(HW, bpp, tile_spatial)
    n_tiles = pl.cdiv(HW, tw)
    nh, tph = _grid_split(n_tiles)
    grid = (B, nh, tph)
    params = _compiler_params(bpp * tw)

    f_spec = pl.BlockSpec((None, C, tw), lambda b, h, i: (b, 0, h * tph + i))
    m_spec = pl.BlockSpec((None, 1, tw), lambda b, h, i: (b, 0, h * tph + i))
    vec_c = pl.BlockSpec((None, None, C, 1), lambda b, h, i: (b, h, 0, 0))
    vec_1 = pl.BlockSpec((None, None, 1, 1), lambda b, h, i: (b, h, 0, 0))

    kernel = _make_moment_kernel(HW, tw, tph, with_kink)

    if with_kink:
        return pl.pallas_call(
            kernel,
            out_shape=(jax.ShapeDtypeStruct((B, nh, C, 1), jnp.float32),
                       jax.ShapeDtypeStruct((B, nh, 1, 1), jnp.float32),
                       jax.ShapeDtypeStruct((B, nh, C, 1), jnp.float32),
                       jax.ShapeDtypeStruct((B, nh, C, 1), jnp.float32),
                       jax.ShapeDtypeStruct((B, nh, 1, 1), jnp.float32)),
            grid=grid,
            in_specs=[f_spec, m_spec, m_spec],
            out_specs=(vec_c, vec_1, vec_c, vec_c, vec_1),
            compiler_params=params,
        )(f, oc3, kk3)
    return pl.pallas_call(
        kernel,
        out_shape=(jax.ShapeDtypeStruct((B, nh, C, 1), jnp.float32),
                   jax.ShapeDtypeStruct((B, nh, 1, 1), jnp.float32)),
        grid=grid,
        in_specs=[f_spec, m_spec],
        out_specs=(vec_c, vec_1),
        compiler_params=params,
    )(f, oc3)


# ---------------------------------------------------------------------------
# Kernel 2 ('cos_mse' second pass): sum over kink pixels of
#   (cosine(f, center) - odoc)^2  with a pre-normalized center, plus cnt_kk.
# Folded variant: spatial axis viewed as (8 sublanes, HW/8 lanes) so the
# per-pixel intermediates are fully sublane-dense.
# ---------------------------------------------------------------------------
def _make_cos_kernel_folded(hw8, tw8, tph, eps):
    ragged = (hw8 % tw8) != 0
    eps2 = float(eps) * float(eps)   # plain Python float: NOT a captured jax array

    def kernel(c_ref, f_ref, oc_ref, kk_ref, sq_ref, cnt_ref):
        @pl.when(pl.program_id(2) == 0)
        def _():
            sq_ref[...] = jnp.zeros_like(sq_ref)
            cnt_ref[...] = jnp.zeros_like(cnt_ref)

        c = c_ref[...]                               # (C, 1, 1), pre-normalized
        f = f_ref[...].astype(jnp.float32)           # (C, 8, TW8)
        m_kk = kk_ref[...] == 1                      # (8, TW8)
        if ragged:
            g = pl.program_id(1) * tph + pl.program_id(2)
            col = jax.lax.broadcasted_iota(jnp.int32, m_kk.shape, 1)
            m_kk = jnp.logical_and(m_kk, (g * tw8 + col) < hw8)

        target = oc_ref[...].astype(jnp.float32)     # (8, TW8)
        dotp = jnp.sum(f * c, axis=0)                # (8, TW8)
        fsq = jnp.sum(f * f, axis=0)                 # (8, TW8)
        # 1 / max(||f||, eps) == rsqrt(max(||f||^2, eps^2)) -> EUP slot
        simi = dotp * jax.lax.rsqrt(jnp.maximum(fsq, eps2))
        d = simi - target
        sq_ref[...] += jnp.sum(jnp.where(m_kk, d * d, 0.0), axis=(0, 1), keepdims=True)
        cnt_ref[...] += jnp.sum(m_kk.astype(jnp.float32), axis=(0, 1), keepdims=True)

    return kernel


def _make_cos_kernel_flat(hw, tw, tph, eps):
    ragged = (hw % tw) != 0
    eps2 = float(eps) * float(eps)

    def kernel(c_ref, f_ref, oc_ref, kk_ref, sq_ref, cnt_ref):
        @pl.when(pl.program_id(2) == 0)
        def _():
            sq_ref[...] = jnp.zeros_like(sq_ref)
            cnt_ref[...] = jnp.zeros_like(cnt_ref)

        c = c_ref[...]                               # (C, 1)
        f = f_ref[...].astype(jnp.float32)           # (C, TW)
        m_kk = kk_ref[...] == 1                      # (1, TW)
        if ragged:
            g = pl.program_id(1) * tph + pl.program_id(2)
            lane = jax.lax.broadcasted_iota(jnp.int32, m_kk.shape, 1)
            m_kk = jnp.logical_and(m_kk, (g * tw + lane) < hw)

        target = oc_ref[...].astype(jnp.float32)     # (1, TW)
        dotp = jnp.sum(f * c, axis=0, keepdims=True)
        fsq = jnp.sum(f * f, axis=0, keepdims=True)
        simi = dotp * jax.lax.rsqrt(jnp.maximum(fsq, eps2))
        d = simi - target
        sq_ref[...] += jnp.sum(jnp.where(m_kk, d * d, 0.0), axis=1, keepdims=True)
        cnt_ref[...] += jnp.sum(m_kk.astype(jnp.float32), axis=1, keepdims=True)

    return kernel


def _cos_pass(c_hat, f_flat, oc2d, kk2d, B, C, HW, eps, tile_spatial, tile_cols):
    bpp = f_flat.dtype.itemsize * C + oc2d.dtype.itemsize + kk2d.dtype.itemsize
    out1 = pl.BlockSpec((None, None, 1, 1), lambda b, h, i: (b, h, 0, 0))

    if HW % 8 == 0:
        # sublane-folded layout: all views are free (row-major reshape only)
        HW8 = HW // 8
        f4 = f_flat.reshape(B, C, 8, HW8)
        oc4 = oc2d.reshape(B, 8, HW8)
        kk4 = kk2d.reshape(B, 8, HW8)
        tw8 = _pick_tile(HW8, bpp * 8, tile_cols)
        n_tiles = pl.cdiv(HW8, tw8)
        nh, tph = _grid_split(n_tiles)
        params = _compiler_params(bpp * 8 * tw8)
        return pl.pallas_call(
            _make_cos_kernel_folded(HW8, tw8, tph, eps),
            out_shape=(jax.ShapeDtypeStruct((B, nh, 1, 1), jnp.float32),
                       jax.ShapeDtypeStruct((B, nh, 1, 1), jnp.float32)),
            grid=(B, nh, tph),
            in_specs=[
                pl.BlockSpec((C, 1, 1), lambda b, h, i: (0, 0, 0)),
                pl.BlockSpec((None, C, 8, tw8), lambda b, h, i: (b, 0, 0, h * tph + i)),
                pl.BlockSpec((None, 8, tw8), lambda b, h, i: (b, 0, h * tph + i)),
                pl.BlockSpec((None, 8, tw8), lambda b, h, i: (b, 0, h * tph + i)),
            ],
            out_specs=(out1, out1),
            compiler_params=params,
        )(c_hat.reshape(C, 1, 1), f4, oc4, kk4)

    # flat fallback (HW not a multiple of 8)
    oc3 = oc2d.reshape(B, 1, HW)
    kk3 = kk2d.reshape(B, 1, HW)
    tw = _pick_tile(HW, bpp, tile_spatial)
    n_tiles = pl.cdiv(HW, tw)
    nh, tph = _grid_split(n_tiles)
    params = _compiler_params(bpp * tw)
    return pl.pallas_call(
        _make_cos_kernel_flat(HW, tw, tph, eps),
        out_shape=(jax.ShapeDtypeStruct((B, nh, 1, 1), jnp.float32),
                   jax.ShapeDtypeStruct((B, nh, 1, 1), jnp.float32)),
        grid=(B, nh, tph),
        in_specs=[
            pl.BlockSpec((C, 1), lambda b, h, i: (0, 0)),
            pl.BlockSpec((None, C, tw), lambda b, h, i: (b, 0, h * tph + i)),
            pl.BlockSpec((None, 1, tw), lambda b, h, i: (b, 0, h * tph + i)),
            pl.BlockSpec((None, 1, tw), lambda b, h, i: (b, 0, h * tph + i)),
        ],
        out_specs=(out1, out1),
        compiler_params=params,
    )(c_hat.reshape(C, 1), f_flat, oc3, kk3)


# ---------------------------------------------------------------------------
# Wrapper (plain-JAX glue).
#   features : (B, C, H, W) f32 or bf16
#   odoc_mask, kink_mask : (B, H, W) integer (int8/uint8 cheapest, int32 ok)
#   tile_spatial : optional pixel-tile override (multiple of 128)
#   tile_cols    : optional column-tile override for the folded cos kernel
# ---------------------------------------------------------------------------
def kink_loss(features, odoc_mask, kink_mask, mse_type="mse",
              tile_spatial=None, tile_cols=None):
    B, C, H, W = features.shape
    HW = H * W

    # Free views only -- no transpose, no pad, no dtype cast of features/masks.
    f = features.reshape(B, C, HW)
    oc2d = odoc_mask.reshape(B, HW)
    kk2d = kink_mask.reshape(B, HW)
    oc3 = oc2d.reshape(B, 1, HW)
    kk3 = kk2d.reshape(B, 1, HW)

    if mse_type == "mse":
        s_oc, cnt_oc, s_kk, ss_kk, cnt_kk = _moment_pass(
            f, oc3, kk3, B, C, HW, tile_spatial, with_kink=True)
    else:
        s_oc, cnt_oc = _moment_pass(
            f, oc3, None, B, C, HW, tile_spatial, with_kink=False)

    # OC feature center (NaN if the OC region is empty, like torch.mean over
    # an empty tensor) -- detached in the reference module.
    sum_oc = jnp.sum(s_oc, axis=(0, 1))[:, 0]               # (C,)
    n_oc = jnp.sum(cnt_oc)
    center = jax.lax.stop_gradient(sum_oc / n_oc)           # (C,)

    if mse_type == "mse":
        # sum_kink |f - c|^2 = SS - 2 c.S + K |c|^2  (moment decomposition).
        # NOTE: slightly different rounding than the direct torch sum; clamp
        # at 0 against catastrophic cancellation. NaN (empty OC) propagates.
        n_kk = jnp.sum(cnt_kk)
        s_f = jnp.sum(s_kk, axis=(0, 1))[:, 0]              # (C,)
        s_ff = jnp.sum(ss_kk)
        sq = s_ff - 2.0 * jnp.sum(center * s_f) + n_kk * jnp.sum(center * center)
        sq = jnp.maximum(sq, 0.0)
        mse = sq / (n_kk * jnp.float32(C))
    else:  # 'cos_mse'
        eps = 1e-8
        c_norm = jnp.maximum(jnp.sqrt(jnp.sum(center * center)), jnp.float32(eps))
        c_hat = (center / c_norm).astype(jnp.float32)
        sq, cnt_kk = _cos_pass(c_hat, f, oc2d, kk2d, B, C, HW, eps,
                               tile_spatial, tile_cols)
        mse = jnp.sum(sq) / jnp.sum(cnt_kk)

    # torch: `if torch.isnan(mse_loss): return torch.zeros(1)` -- keep (1,).
    return jnp.where(jnp.isnan(mse), jnp.float32(0.0), mse).reshape(1)


# ---------------------------------------------------------------------------
# Pure-JAX references (no Pallas) for sanity checking.
# ---------------------------------------------------------------------------
def _ref_mse(features, odoc_mask, kink_mask):
    f = features.astype(jnp.float32)
    ocm = (odoc_mask == 2).astype(jnp.float32)[:, None]      # (B,1,H,W)
    kkm = (kink_mask == 1).astype(jnp.float32)[:, None]
    center = jnp.sum(f * ocm, axis=(0, 2, 3)) / jnp.sum(ocm)  # (C,)
    d = f - center[None, :, None, None]
    return jnp.sum(d * d * kkm) / (jnp.sum(kkm) * f.shape[1])


def _ref_cos_mse(features, odoc_mask, kink_mask):
    f = features.astype(jnp.float32)
    ocm = (odoc_mask == 2).astype(jnp.float32)[:, None]
    kkb = (kink_mask == 1)
    center = jnp.sum(f * ocm, axis=(0, 2, 3)) / jnp.sum(ocm)  # (C,)
    eps = jnp.float32(1e-8)
    cn = jnp.maximum(jnp.sqrt(jnp.sum(center * center)), eps)
    fn = jnp.maximum(jnp.sqrt(jnp.sum(f * f, axis=1)), eps)   # (B,H,W)
    simi = jnp.sum(f * center[None, :, None, None], axis=1) / (cn * fn)
    d = simi - odoc_mask.astype(jnp.float32)
    return jnp.sum(jnp.where(kkb, d * d, 0.0)) / jnp.sum(kkb.astype(jnp.float32))


if __name__ == "__main__":
    keys = jax.random.split(jax.random.PRNGKey(0), 10)

    def check(name, got, want, rtol=1e-4, atol=1e-5):
        assert got.shape == (1,), (name, got.shape)
        assert bool(jnp.isfinite(got[0])), (name, got)
        assert jnp.allclose(got[0], want, rtol=rtol, atol=atol), (name, got, want)

    # ---- case 1: B=2, C=4, 16x16, f32 features, int32 masks -----------------
    B, C, H, W = 2, 4, 16, 16
    feats = jax.random.normal(keys[0], (B, C, H, W), dtype=jnp.float32)
    ocm = jax.random.randint(keys[1], (B, H, W), 0, 3, dtype=jnp.int32)   # {0,1,2}
    kkm = jax.random.randint(keys[2], (B, H, W), 0, 2, dtype=jnp.int32)   # {0,1}
    check("mse", jax.block_until_ready(kink_loss(feats, ocm, kkm, "mse")),
          _ref_mse(feats, ocm, kkm))
    check("cos", jax.block_until_ready(kink_loss(feats, ocm, kkm, "cos_mse")),
          _ref_cos_mse(feats, ocm, kkm))

    # ---- case 2: ragged flat tiles + dual-half grid, int8 masks -------------
    H2, W2 = 16, 40                                   # HW=640, tile 512 -> 2 tiles
    f2 = jax.random.normal(keys[3], (B, C, H2, W2), dtype=jnp.float32)
    oc2 = jax.random.randint(keys[4], (B, H2, W2), 0, 3, dtype=jnp.int32).astype(jnp.int8)
    kk2 = jax.random.randint(keys[5], (B, H2, W2), 0, 2, dtype=jnp.int32).astype(jnp.int8)
    check("mse-ragged",
          jax.block_until_ready(kink_loss(f2, oc2, kk2, "mse", tile_spatial=512)),
          _ref_mse(f2, oc2, kk2))
    check("cos-ragged",
          jax.block_until_ready(kink_loss(f2, oc2, kk2, "cos_mse", tile_spatial=512)),
          _ref_cos_mse(f2, oc2, kk2))

    # ---- case 3: folded cos kernel with ragged column tiles + halves --------
    H3, W3 = 32, 48                                   # HW8=192, tile_cols=128 -> ragged
    f3 = jax.random.normal(keys[6], (B, C, H3, W3), dtype=jnp.float32)
    oc3m = jax.random.randint(keys[7], (B, H3, W3), 0, 3, dtype=jnp.int32)
    kk3m = jax.random.randint(keys[8], (B, H3, W3), 0, 2, dtype=jnp.int32)
    check("cos-folded-ragged",
          jax.block_until_ready(kink_loss(f3, oc3m, kk3m, "cos_mse", tile_cols=128)),
          _ref_cos_mse(f3, oc3m, kk3m))

    # ---- case 4: HW not a multiple of 8 -> flat cos fallback ----------------
    H4, W4 = 3, 5
    f4 = jax.random.normal(keys[9], (B, C, H4, W4), dtype=jnp.float32)
    oc4 = jnp.zeros((B, H4, W4), jnp.int32).at[:, 0, 0].set(2).at[:, 1, 1].set(2)
    kk4 = jnp.zeros((B, H4, W4), jnp.int32).at[:, 2, 2].set(1).at[:, 2, 3].set(1)
    check("mse-small", jax.block_until_ready(kink_loss(f4, oc4, kk4, "mse")),
          _ref_mse(f4, oc4, kk4))
    check("cos-small-flat", jax.block_until_ready(kink_loss(f4, oc4, kk4, "cos_mse")),
          _ref_cos_mse(f4, oc4, kk4))

    # ---- case 5: bf16 features (kernel upcasts; HBM stream halves) ----------
    fb = feats.astype(jnp.bfloat16)
    check("mse-bf16", jax.block_until_ready(kink_loss(fb, ocm, kkm, "mse")),
          _ref_mse(fb, ocm, kkm), rtol=1e-3, atol=1e-4)
    check("cos-bf16", jax.block_until_ready(kink_loss(fb, ocm, kkm, "cos_mse")),
          _ref_cos_mse(fb, ocm, kkm), rtol=1e-3, atol=1e-4)

    # ---- case 6: empty OC region -> NaN center -> loss 0 (torch semantics) --
    oc_empty = jnp.zeros((B, H, W), jnp.int32)
    l6m = jax.block_until_ready(kink_loss(feats, oc_empty, kkm, "mse"))
    l6c = jax.block_until_ready(kink_loss(feats, oc_empty, kkm, "cos_mse"))
    assert l6m.shape == (1,) and float(l6m[0]) == 0.0
    assert l6c.shape == (1,) and float(l6c[0]) == 0.0

    print("KERNEL_OK")
</pallas_src>

<mosaic_0001>
module attributes {stable_mosaic.version = 11 : i64} {
  func.func @kernel(%arg0: i32, %arg1: i32, %arg2: i32, %arg3: memref<1x4x256xf32, #tpu.memory_space<vmem>>, %arg4: memref<1x1x256xi32, #tpu.memory_space<vmem>>, %arg5: memref<1x1x256xi32, #tpu.memory_space<vmem>>, %arg6: memref<1x1x4x1xf32, #tpu.memory_space<vmem>>, %arg7: memref<1x1x1x1xf32, #tpu.memory_space<vmem>>, %arg8: memref<1x1x4x1xf32, #tpu.memory_space<vmem>>, %arg9: memref<1x1x4x1xf32, #tpu.memory_space<vmem>>, %arg10: memref<1x1x1x1xf32, #tpu.memory_space<vmem>>) attributes {dimension_semantics = [#tpu.dimension_semantics<parallel>, #tpu.dimension_semantics<parallel>, #tpu.dimension_semantics<arbitrary>], iteration_bounds = array<i64: 2, 1, 1>, scalar_prefetch = 0 : i64, scratch_operands = 0 : i64, tpu.core_type = #tpu.core_type<tc>, window_params = [{transform_indices = @transform_0, window_bounds = array<i64: 1, 4, 256>}, {transform_indices = @transform_1, window_bounds = array<i64: 1, 1, 256>}, {transform_indices = @transform_2, window_bounds = array<i64: 1, 1, 256>}, {transform_indices = @transform_3, window_bounds = array<i64: 1, 1, 4, 1>}, {transform_indices = @transform_4, window_bounds = array<i64: 1, 1, 1, 1>}, {transform_indices = @transform_5, window_bounds = array<i64: 1, 1, 4, 1>}, {transform_indices = @transform_6, window_bounds = array<i64: 1, 1, 4, 1>}, {transform_indices = @transform_7, window_bounds = array<i64: 1, 1, 1, 1>}]} {
    %c0_i32 = arith.constant 0 : i32
    %0 = arith.cmpi eq, %arg2, %c0_i32 : i32
    %1 = arith.extui %0 : i1 to i32
    %c0_i32_0 = arith.constant 0 : i32
    %2 = arith.cmpi ne, %1, %c0_i32_0 : i32
    scf.if %2 {
      %cst_55 = arith.constant 0.000000e+00 : f32
      %66 = vector.broadcast %cst_55 : f32 to vector<4x1xf32>
      %c0_56 = arith.constant 0 : index
      %c0_57 = arith.constant 0 : index
      %c0_58 = arith.constant 0 : index
      %c0_59 = arith.constant 0 : index
      %67 = vector.load %arg6[%c0_56, %c0_57, %c0_58, %c0_59] : memref<1x1x4x1xf32, #tpu.memory_space<vmem>>, vector<1x1x4x1xf32>
      %68 = vector.shape_cast %67 : vector<1x1x4x1xf32> to vector<4x1xf32>
      %69 = vector.shape_cast %66 : vector<4x1xf32> to vector<1x1x4x1xf32>
      tpu.vector_store %arg6[%c0_56, %c0_57, %c0_58, %c0_59], %69 {strides = array<i32>} : memref<1x1x4x1xf32, #tpu.memory_space<vmem>>, vector<1x1x4x1xf32>,
      %cst_60 = arith.constant 0.000000e+00 : f32
      %70 = vector.broadcast %cst_60 : f32 to vector<1x1xf32>
      %c0_61 = arith.constant 0 : index
      %c0_62 = arith.constant 0 : index
      %c0_63 = arith.constant 0 : index
      %c0_64 = arith.constant 0 : index
      %71 = vector.load %arg7[%c0_61, %c0_62, %c0_63, %c0_64] : memref<1x1x1x1xf32, #tpu.memory_space<vmem>>, vector<1x1x1x1xf32>
      %72 = vector.shape_cast %71 : vector<1x1x1x1xf32> to vector<1x1xf32>
      %73 = vector.shape_cast %70 : vector<1x1xf32> to vector<1x1x1x1xf32>
      tpu.vector_store %arg7[%c0_61, %c0_62, %c0_63, %c0_64], %73 {strides = array<i32>} : memref<1x1x1x1xf32, #tpu.memory_space<vmem>>, vector<1x1x1x1xf32>,
      %cst_65 = arith.constant 0.000000e+00 : f32
      %74 = vector.broadcast %cst_65 : f32 to vector<4x1xf32>
      %c0_66 = arith.constant 0 : index
      %c0_67 = arith.constant 0 : index
      %c0_68 = arith.constant 0 : index
      %c0_69 = arith.constant 0 : index
      %75 = vector.load %arg8[%c0_66, %c0_67, %c0_68, %c0_69] : memref<1x1x4x1xf32, #tpu.memory_space<vmem>>, vector<1x1x4x1xf32>
      %76 = vector.shape_cast %75 : vector<1x1x4x1xf32> to vector<4x1xf32>
      %77 = vector.shape_cast %74 : vector<4x1xf32> to vector<1x1x4x1xf32>
      tpu.vector_store %arg8[%c0_66, %c0_67, %c0_68, %c0_69], %77 {strides = array<i32>} : memref<1x1x4x1xf32, #tpu.memory_space<vmem>>, vector<1x1x4x1xf32>,
      %cst_70 = arith.constant 0.000000e+00 : f32
      %78 = vector.broadcast %cst_70 : f32 to vector<4x1xf32>
      %c0_71 = arith.constant 0 : index
      %c0_72 = arith.constant 0 : index
      %c0_73 = arith.constant 0 : index
      %c0_74 = arith.constant 0 : index
      %79 = vector.load %arg9[%c0_71, %c0_72, %c0_73, %c0_74] : memref<1x1x4x1xf32, #tpu.memory_space<vmem>>, vector<1x1x4x1xf32>
      %80 = vector.shape_cast %79 : vector<1x1x4x1xf32> to vector<4x1xf32>
      %81 = vector.shape_cast %78 : vector<4x1xf32> to vector<1x1x4x1xf32>
      tpu.vector_store %arg9[%c0_71, %c0_72, %c0_73, %c0_74], %81 {strides = array<i32>} : memref<1x1x4x1xf32, #tpu.memory_space<vmem>>, vector<1x1x4x1xf32>,
      %cst_75 = arith.constant 0.000000e+00 : f32
      %82 = vector.broadcast %cst_75 : f32 to vector<1x1xf32>
      %c0_76 = arith.constant 0 : index
      %c0_77 = arith.constant 0 : index
      %c0_78 = arith.constant 0 : index
      %c0_79 = arith.constant 0 : index
      %83 = vector.load %arg10[%c0_76, %c0_77, %c0_78, %c0_79] : memref<1x1x1x1xf32, #tpu.memory_space<vmem>>, vector<1x1x1x1xf32>
      %84 = vector.shape_cast %83 : vector<1x1x1x1xf32> to vector<1x1xf32>
      %85 = vector.shape_cast %82 : vector<1x1xf32> to vector<1x1x1x1xf32>
      tpu.vector_store %arg10[%c0_76, %c0_77, %c0_78, %c0_79], %85 {strides = array<i32>} : memref<1x1x1x1xf32, #tpu.memory_space<vmem>>, vector<1x1x1x1xf32>,
    } else {
    }
    %c0 = arith.constant 0 : index
    %c0_1 = arith.constant 0 : index
    %c0_2 = arith.constant 0 : index
    %3 = vector.load %arg3[%c0, %c0_1, %c0_2] : memref<1x4x256xf32, #tpu.memory_space<vmem>>, vector<1x4x256xf32>
    %4 = vector.shape_cast %3 : vector<1x4x256xf32> to vector<4x256xf32>
    %c0_3 = arith.constant 0 : index
    %c0_4 = arith.constant 0 : index
    %c0_5 = arith.constant 0 : index
    %5 = vector.load %arg4[%c0_3, %c0_4, %c0_5] : memref<1x1x256xi32, #tpu.memory_space<vmem>>, vector<1x1x256xi32>
    %6 = vector.shape_cast %5 : vector<1x1x256xi32> to vector<1x256xi32>
    %c2_i32 = arith.constant 2 : i32
    %7 = vector.broadcast %c2_i32 : i32 to vector<1x256xi32>
    %8 = arith.cmpi eq, %6, %7 : vector<1x256xi32>
    %c0_6 = arith.constant 0 : index
    %c0_7 = arith.constant 0 : index
    %c0_8 = arith.constant 0 : index
    %9 = vector.load %arg5[%c0_6, %c0_7, %c0_8] : memref<1x1x256xi32, #tpu.memory_space<vmem>>, vector<1x1x256xi32>
    %10 = vector.shape_cast %9 : vector<1x1x256xi32> to vector<1x256xi32>
    %c1_i32 = arith.constant 1 : i32
    %11 = vector.broadcast %c1_i32 : i32 to vector<1x256xi32>
    %12 = arith.cmpi eq, %10, %11 : vector<1x256xi32>
    %cst = arith.constant 0.000000e+00 : f32
    %13 = vector.shape_cast %8 : vector<1x256xi1> to vector<1x256xi1>
    %14 = vector.broadcast %13 : vector<1x256xi1> to vector<4x256xi1>
    %15 = vector.broadcast %cst : f32 to vector<4x256xf32>
    %16 = arith.select %14, %4, %15 : vector<4x256xi1>, vector<4x256xf32>
    %c0_9 = arith.constant 0 : index
    %c0_10 = arith.constant 0 : index
    %c0_11 = arith.constant 0 : index
    %c0_12 = arith.constant 0 : index
    %17 = vector.load %arg6[%c0_9, %c0_10, %c0_11, %c0_12] : memref<1x1x4x1xf32, #tpu.memory_space<vmem>>, vector<1x1x4x1xf32>
    %18 = vector.shape_cast %17 : vector<1x1x4x1xf32> to vector<4x1xf32>
    %cst_13 = arith.constant dense<0.000000e+00> : vector<4xf32>
    %19 = vector.multi_reduction <add>, %16, %cst_13 [1] : vector<4x256xf32> to vector<4xf32>
    %20 = vector.shape_cast %19 : vector<4xf32> to vector<4x1xf32>
    %21 = arith.addf %18, %20 : vector<4x1xf32>
    %c0_14 = arith.constant 0 : index
    %c0_15 = arith.constant 0 : index
    %c0_16 = arith.constant 0 : index
    %c0_17 = arith.constant 0 : index
    %22 = vector.load %arg6[%c0_14, %c0_15, %c0_16, %c0_17] : memref<1x1x4x1xf32, #tpu.memory_space<vmem>>, vector<1x1x4x1xf32>
    %23 = vector.shape_cast %22 : vector<1x1x4x1xf32> to vector<4x1xf32>
    %24 = vector.shape_cast %21 : vector<4x1xf32> to vector<1x1x4x1xf32>
    tpu.vector_store %arg6[%c0_14, %c0_15, %c0_16, %c0_17], %24 {strides = array<i32>} : memref<1x1x4x1xf32, #tpu.memory_space<vmem>>, vector<1x1x4x1xf32>,
    %c0_18 = arith.constant 0 : index
    %c0_19 = arith.constant 0 : index
    %c0_20 = arith.constant 0 : index
    %c0_21 = arith.constant 0 : index
    %25 = vector.load %arg7[%c0_18, %c0_19, %c0_20, %c0_21] : memref<1x1x1x1xf32, #tpu.memory_space<vmem>>, vector<1x1x1x1xf32>
    %26 = vector.shape_cast %25 : vector<1x1x1x1xf32> to vector<1x1xf32>
    %27 = arith.extui %8 : vector<1x256xi1> to vector<1x256xi32>
    %28 = arith.sitofp %27 : vector<1x256xi32> to vector<1x256xf32>
    %cst_22 = arith.constant dense<0.000000e+00> : vector<1xf32>
    %29 = vector.multi_reduction <add>, %28, %cst_22 [1] : vector<1x256xf32> to vector<1xf32>
    %30 = vector.shape_cast %29 : vector<1xf32> to vector<1x1xf32>
    %31 = arith.addf %26, %30 : vector<1x1xf32>
    %c0_23 = arith.constant 0 : index
    %c0_24 = arith.constant 0 : index
    %c0_25 = arith.constant 0 : index
    %c0_26 = arith.constant 0 : index
    %32 = vector.load %arg7[%c0_23, %c0_24, %c0_25, %c0_26] : memref<1x1x1x1xf32, #tpu.memory_space<vmem>>, vector<1x1x1x1xf32>
    %33 = vector.shape_cast %32 : vector<1x1x1x1xf32> to vector<1x1xf32>
    %34 = vector.shape_cast %31 : vector<1x1xf32> to vector<1x1x1x1xf32>
    tpu.vector_store %arg7[%c0_23, %c0_24, %c0_25, %c0_26], %34 {strides = array<i32>} : memref<1x1x1x1xf32, #tpu.memory_space<vmem>>, vector<1x1x1x1xf32>,
    %cst_27 = arith.constant 0.000000e+00 : f32
    %35 = vector.shape_cast %12 : vector<1x256xi1> to vector<1x256xi1>
    %36 = vector.broadcast %35 : vector<1x256xi1> to vector<4x256xi1>
    %37 = vector.broadcast %cst_27 : f32 to vector<4x256xf32>
    %38 = arith.select %36, %4, %37 : vector<4x256xi1>, vector<4x256xf32>
    %c0_28 = arith.constant 0 : index
    %c0_29 = arith.constant 0 : index
    %c0_30 = arith.constant 0 : index
    %c0_31 = arith.constant 0 : index
    %39 = vector.load %arg8[%c0_28, %c0_29, %c0_30, %c0_31] : memref<1x1x4x1xf32, #tpu.memory_space<vmem>>, vector<1x1x4x1xf32>
    %40 = vector.shape_cast %39 : vector<1x1x4x1xf32> to vector<4x1xf32>
    %cst_32 = arith.constant dense<0.000000e+00> : vector<4xf32>
    %41 = vector.multi_reduction <add>, %38, %cst_32 [1] : vector<4x256xf32> to vector<4xf32>
    %42 = vector.shape_cast %41 : vector<4xf32> to vector<4x1xf32>
    %43 = arith.addf %40, %42 : vector<4x1xf32>
    %c0_33 = arith.constant 0 : index
    %c0_34 = arith.constant 0 : index
    %c0_35 = arith.constant 0 : index
    %c0_36 = arith.constant 0 : index
    %44 = vector.load %arg8[%c0_33, %c0_34, %c0_35, %c0_36] : memref<1x1x4x1xf32, #tpu.memory_space<vmem>>, vector<1x1x4x1xf32>
    %45 = vector.shape_cast %44 : vector<1x1x4x1xf32> to vector<4x1xf32>
    %46 = vector.shape_cast %43 : vector<4x1xf32> to vector<1x1x4x1xf32>
    tpu.vector_store %arg8[%c0_33, %c0_34, %c0_35, %c0_36], %46 {strides = array<i32>} : memref<1x1x4x1xf32, #tpu.memory_space<vmem>>, vector<1x1x4x1xf32>,
    %c0_37 = arith.constant 0 : index
    %c0_38 = arith.constant 0 : index
    %c0_39 = arith.constant 0 : index
    %c0_40 = arith.constant 0 : index
    %47 = vector.load %arg9[%c0_37, %c0_38, %c0_39, %c0_40] : memref<1x1x4x1xf32, #tpu.memory_space<vmem>>, vector<1x1x4x1xf32>
    %48 = vector.shape_cast %47 : vector<1x1x4x1xf32> to vector<4x1xf32>
    %49 = arith.mulf %38, %38 : vector<4x256xf32>
    %cst_41 = arith.constant dense<0.000000e+00> : vector<4xf32>
    %50 = vector.multi_reduction <add>, %49, %cst_41 [1] : vector<4x256xf32> to vector<4xf32>
    %51 = vector.shape_cast %50 : vector<4xf32> to vector<4x1xf32>
    %52 = arith.addf %48, %51 : vector<4x1xf32>
    %c0_42 = arith.constant 0 : index
    %c0_43 = arith.constant 0 : index
    %c0_44 = arith.constant 0 : index
    %c0_45 = arith.constant 0 : index
    %53 = vector.load %arg9[%c0_42, %c0_43, %c0_44, %c0_45] : memref<1x1x4x1xf32, #tpu.memory_space<vmem>>, vector<1x1x4x1xf32>
    %54 = vector.shape_cast %53 : vector<1x1x4x1xf32> to vector<4x1xf32>
    %55 = vector.shape_cast %52 : vector<4x1xf32> to vector<1x1x4x1xf32>
    tpu.vector_store %arg9[%c0_42, %c0_43, %c0_44, %c0_45], %55 {strides = array<i32>} : memref<1x1x4x1xf32, #tpu.memory_space<vmem>>, vector<1x1x4x1xf32>,
    %c0_46 = arith.constant 0 : index
    %c0_47 = arith.constant 0 : index
    %c0_48 = arith.constant 0 : index
    %c0_49 = arith.constant 0 : index
    %56 = vector.load %arg10[%c0_46, %c0_47, %c0_48, %c0_49] : memref<1x1x1x1xf32, #tpu.memory_space<vmem>>, vector<1x1x1x1xf32>
    %57 = vector.shape_cast %56 : vector<1x1x1x1xf32> to vector<1x1xf32>
    %58 = arith.extui %12 : vector<1x256xi1> to vector<1x256xi32>
    %59 = arith.sitofp %58 : vector<1x256xi32> to vector<1x256xf32>
    %cst_50 = arith.constant dense<0.000000e+00> : vector<1xf32>
    %60 = vector.multi_reduction <add>, %59, %cst_50 [1] : vector<1x256xf32> to vector<1xf32>
    %61 = vector.shape_cast %60 : vector<1xf32> to vector<1x1xf32>
    %62 = arith.addf %57, %61 : vector<1x1xf32>
    %c0_51 = arith.constant 0 : index
    %c0_52 = arith.constant 0 : index
    %c0_53 = arith.constant 0 : index
    %c0_54 = arith.constant 0 : index
    %63 = vector.load %arg10[%c0_51, %c0_52, %c0_53, %c0_54] : memref<1x1x1x1xf32, #tpu.memory_space<vmem>>, vector<1x1x1x1xf32>
    %64 = vector.shape_cast %63 : vector<1x1x1x1xf32> to vector<1x1xf32>
    %65 = vector.shape_cast %62 : vector<1x1xf32> to vector<1x1x1x1xf32>
    tpu.vector_store %arg10[%c0_51, %c0_52, %c0_53, %c0_54], %65 {strides = array<i32>} : memref<1x1x1x1xf32, #tpu.memory_space<vmem>>, vector<1x1x1x1xf32>,
    return
  }
  func.func @transform_0(%arg0: i32, %arg1: i32, %arg2: i32) -> (i32, i32, i32) {
    %c1_i32 = arith.constant 1 : i32
    %0 = arith.muli %arg1, %c1_i32 : i32
    %1 = arith.addi %0, %arg2 : i32
    %c0_i32 = arith.constant 0 : i32
    %c0_i32_0 = arith.constant 0 : i32
    return %arg0, %c0_i32, %1 : i32, i32, i32
  }
  func.func @transform_1(%arg0: i32, %arg1: i32, %arg2: i32) -> (i32, i32, i32) {
    %c1_i32 = arith.constant 1 : i32
    %0 = arith.muli %arg1, %c1_i32 : i32
    %1 = arith.addi %0, %arg2 : i32
    %c0_i32 = arith.constant 0 : i32
    %c0_i32_0 = arith.constant 0 : i32
    return %arg0, %c0_i32, %1 : i32, i32, i32
  }
  func.func @transform_2(%arg0: i32, %arg1: i32, %arg2: i32) -> (i32, i32, i32) {
    %c1_i32 = arith.constant 1 : i32
    %0 = arith.muli %arg1, %c1_i32 : i32
    %1 = arith.addi %0, %arg2 : i32
    %c0_i32 = arith.constant 0 : i32
    %c0_i32_0 = arith.constant 0 : i32
    return %arg0, %c0_i32, %1 : i32, i32, i32
  }
  func.func @transform_3(%arg0: i32, %arg1: i32, %arg2: i32) -> (i32, i32, i32, i32) {
    %c0_i32 = arith.constant 0 : i32
    %c0_i32_0 = arith.constant 0 : i32
    %c0_i32_1 = arith.constant 0 : i32
    return %arg0, %arg1, %c0_i32, %c0_i32_0 : i32, i32, i32, i32
  }
  func.func @transform_4(%arg0: i32, %arg1: i32, %arg2: i32) -> (i32, i32, i32, i32) {
    %c0_i32 = arith.constant 0 : i32
    %c0_i32_0 = arith.constant 0 : i32
    %c0_i32_1 = arith.constant 0 : i32
    return %arg0, %arg1, %c0_i32, %c0_i32_0 : i32, i32, i32, i32
  }
  func.func @transform_5(%arg0: i32, %arg1: i32, %arg2: i32) -> (i32, i32, i32, i32) {
    %c0_i32 = arith.constant 0 : i32
    %c0_i32_0 = arith.constant 0 : i32
    %c0_i32_1 = arith.constant 0 : i32
    return %arg0, %arg1, %c0_i32, %c0_i32_0 : i32, i32, i32, i32
  }
  func.func @transform_6(%arg0: i32, %arg1: i32, %arg2: i32) -> (i32, i32, i32, i32) {
    %c0_i32 = arith.constant 0 : i32
    %c0_i32_0 = arith.constant 0 : i32
    %c0_i32_1 = arith.constant 0 : i32
    return %arg0, %arg1, %c0_i32, %c0_i32_0 : i32, i32, i32, i32
  }
  func.func @transform_7(%arg0: i32, %arg1: i32, %arg2: i32) -> (i32, i32, i32, i32) {
    %c0_i32 = arith.constant 0 : i32
    %c0_i32_0 = arith.constant 0 : i32
    %c0_i32_1 = arith.constant 0 : i32
    return %arg0, %arg1, %c0_i32, %c0_i32_0 : i32, i32, i32, i32
  }
}

</mosaic_0001>

<llo_original>
// kernel: tpu_custom_call.1
$region0: #{tpu_custom_call.1}
  #allocation0 [shape = 'u32[]', space=smem, size = 0x4, offset = 0x4, fixed_abs, tag = 'smem constant byte address 0x4 - core index']
  #allocation1 [shape = 'u32[144,128]{1,0:T(1,128)}', space=vmem, size = 0x12000, scoped, tag = 'internal scratch']
  %s0 = inlined_call_operand.hbm [shape: f32[2,4,256], index: 0, kind: input, shape index: {}]
  %s1 = inlined_call_operand.hbm [shape: s32[2,1,256], index: 1, kind: input, shape index: {}]
  %s2 = inlined_call_operand.vmem [shape: s32[2,1,256], index: 2, kind: input, shape index: {}]
  %s3 = inlined_call_operand.vmem [shape: f32[2,1,4,1], index: 3, kind: output, shape index: {0}]
  %s4 = inlined_call_operand.vmem [shape: f32[2,1,1,1], index: 4, kind: output, shape index: {1}]
  %s5 = inlined_call_operand.vmem [shape: f32[2,1,4,1], index: 5, kind: output, shape index: {2}]
  %s6 = inlined_call_operand.vmem [shape: f32[2,1,4,1], index: 6, kind: output, shape index: {3}]
  %s7 = inlined_call_operand.vmem [shape: f32[2,1,1,1], index: 7, kind: output, shape index: {4}]
  %8 = xla_tuple %s3, %s4, %s5, %s6, %s7
  %s9 = sld [smem:[#allocation0]]
  $region89: #{tpu_custom_call.1} parent=0
    _
  %s11 = ssub.s32 1, %s9
  %s12 = scalar_select 0, %s11, %s9
  $region1: #{tpu_custom_call.1} parent=0
    #allocation2 [shape = 'u8[8192]{0}', space=vmem, size = 0x2000, scoped, tag = 'input window, operand 0']
    #allocation3 [shape = 's32[2]{0}', space=sflag, size = 0x8, scoped, tag = 'scoped memory for tpu_custom_call.1']
    #allocation4 [shape = 'u8[2048]{0}', space=vmem, size = 0x800, scoped, tag = 'input window, operand 1']
    #allocation5 [shape = 's32[2]{0}', space=sflag, size = 0x8, scoped, tag = 'scoped memory for tpu_custom_call.1']
    %13 = vsyncpa [#allocation3], 0
    %s14 = scalar_lea.sflag [#allocation3], 1
    %15 = vsyncpa %s14, 0
    %16 = vsyncpa [#allocation5], 0
    %s17 = scalar_lea.sflag [#allocation5], 1
    %18 = vsyncpa %s17, 0
    loop: start=0, step=1, limit=4
    $region2: #{tpu_custom_call.1} parent=1 // loop_pre_header
      _
    $region3: #{tpu_custom_call.1} parent=1 // loop_header
      %s20 = sphi 0, %s24
      %p21 = scmp.ge.s32.totalorder %s20, 4
      %s27 = sphi 0, %s46
      %s28 = sphi 0, %s42
      %s29 = sphi 0, %s38
      %s30 = sphi 0, %s27
      %s31 = sphi 0, %s28
      %s32 = sphi 0, %s29
      %s33 = sphi 0, %s30
      %s34 = sphi 0, %s31
      %s35 = sphi 0, %s32
      %s53 = sphi 0, %s55
      %s56 = sphi 0, %s53
      %s57 = sphi 0, %s56
      %s73 = sphi 0, %s57
      %s83 = sphi 0, %s85
      %s86 = sphi 0, %s83
      %s87 = sphi 0, %s86
      %s103 = sphi 0, %s87
      %s113 = sphi 0, %s115
      %s116 = sphi 0, %s113
      %s117 = sphi 0, %s116
      %s133 = sphi 0, %s117
      %s141 = sphi 0, %s143
      %s144 = sphi 0, %s141
      %s145 = sphi 0, %s144
      %s161 = sphi 0, %s145
      %s169 = sphi 0, %s171
      %s172 = sphi 0, %s169
      %s173 = sphi 0, %s172
      %s189 = sphi 0, %s173
      %s197 = sphi 0, %s199
      %s200 = sphi 0, %s197
      %s201 = sphi 0, %s200
      %s217 = sphi 0, %s201
      %s225 = sphi 0, %s227
      %s228 = sphi 0, %s225
      %s229 = sphi 0, %s228
      %s245 = sphi 0, %s229
      %s253 = sphi 0, %s255
      %s256 = sphi 0, %s253
      %s257 = sphi 0, %s256
      %s273 = sphi 0, %s257
    $region4: #{tpu_custom_call.1} parent=1 // loop_header_branch
      %23 = sbr.rel (%p21) target = $region8
    $region5: #{tpu_custom_call.1} parent=1 // loop_body
      %s25 = ssub.s32 %s20, 1
      %s26 = ssub.s32 %s20, 2
      %s36 = sadd.s32 1, %s29
      %p37 = scmp.ge.s32.totalorder %s36, 1
      %s38 = scalar_select %p37, 0, %s36
      %s39 = sadd.s32 1, %s28
      %s40 = scalar_select %p37, %s39, %s28
      %p41 = scmp.ge.s32.totalorder %s40, 1
      %s42 = scalar_select %p41, 0, %s40
      %s43 = sadd.s32 1, %s27
      %s44 = scalar_select %p41, %s43, %s27
      %p45 = scmp.ge.s32.totalorder %s44, 2
      %s46 = scalar_select %p45, 0, %s44
      %s47 = sadd.s32 %s28, %s29
      %s48 = sadd.s32 %s42, %s38
      %s49 = ssub.s32 %s27, %s46
      %s50 = ssub.s32 %s47, %s48
      %s51 = sor.u32 %s49, %s50
      %p52 = scmp.eq.s32.totalorder %s51, 0
      %s54 = sadd.s32 %s53, 1
      %s55 = scalar_select %p52, %s53, %s54
      %p58 = pneg %p52
      %p59 = scmp.eq.s32.totalorder %s20, 1
      %p60 = por %p58, %p59
      %p61 = scmp.ne.s32.totalorder %s53, %s56
      %p62 = scmp.eq.s32.totalorder %s20, 0
      %p63 = por %p61, %p62
      %p64 = scmp.ne.s32.totalorder %s53, %s56
      %p65 = scmp.eq.s32.totalorder %s25, 1
      %p66 = por %p64, %p65
      %p67 = scmp.ne.s32.totalorder %s56, %s57
      %p68 = scmp.eq.s32.totalorder %s25, 0
      %p69 = por %p67, %p68
      %p70 = scmp.ne.s32.totalorder %s56, %s57
      %p71 = scmp.eq.s32.totalorder %s26, 1
      %p72 = por %p70, %p71
      %p74 = scmp.ne.s32.totalorder %s57, %s73
      %p75 = scmp.eq.s32.totalorder %s26, 0
      %p76 = por %p74, %p75
      %s77 = sadd.s32 %s28, %s29
      %s78 = sadd.s32 %s42, %s38
      %s79 = ssub.s32 %s27, %s46
      %s80 = ssub.s32 %s77, %s78
      %s81 = sor.u32 %s79, %s80
      %p82 = scmp.eq.s32.totalorder %s81, 0
      %s84 = sadd.s32 %s83, 1
      %s85 = scalar_select %p82, %s83, %s84
      %p88 = pneg %p82
      %p89 = scmp.eq.s32.totalorder %s20, 1
      %p90 = por %p88, %p89
      %p91 = scmp.ne.s32.totalorder %s83, %s86
      %p92 = scmp.eq.s32.totalorder %s20, 0
      %p93 = por %p91, %p92
      %p94 = scmp.ne.s32.totalorder %s83, %s86
      %p95 = scmp.eq.s32.totalorder %s25, 1
      %p96 = por %p94, %p95
      %p97 = scmp.ne.s32.totalorder %s86, %s87
      %p98 = scmp.eq.s32.totalorder %s25, 0
      %p99 = por %p97, %p98
      %p100 = scmp.ne.s32.totalorder %s86, %s87
      %p101 = scmp.eq.s32.totalorder %s26, 1
      %p102 = por %p100, %p101
      %p104 = scmp.ne.s32.totalorder %s87, %s103
      %p105 = scmp.eq.s32.totalorder %s26, 0
      %p106 = por %p104, %p105
      %s107 = sadd.s32 %s28, %s29
      %s108 = sadd.s32 %s42, %s38
      %s109 = ssub.s32 %s27, %s46
      %s110 = ssub.s32 %s107, %s108
      %s111 = sor.u32 %s109, %s110
      %p112 = scmp.eq.s32.totalorder %s111, 0
      %s114 = sadd.s32 %s113, 1
      %s115 = scalar_select %p112, %s113, %s114
      %p118 = pneg %p112
      %p119 = scmp.eq.s32.totalorder %s20, 1
      %p120 = por %p118, %p119
      %p121 = scmp.ne.s32.totalorder %s113, %s116
      %p122 = scmp.eq.s32.totalorder %s20, 0
      %p123 = por %p121, %p122
      %p124 = scmp.ne.s32.totalorder %s113, %s116
      %p125 = scmp.eq.s32.totalorder %s25, 1
      %p126 = por %p124, %p125
      %p127 = scmp.ne.s32.totalorder %s116, %s117
      %p128 = scmp.eq.s32.totalorder %s25, 0
      %p129 = por %p127, %p128
      %p130 = scmp.ne.s32.totalorder %s116, %s117
      %p131 = scmp.eq.s32.totalorder %s26, 1
      %p132 = por %p130, %p131
      %p134 = scmp.ne.s32.totalorder %s117, %s133
      %p135 = scmp.eq.s32.totalorder %s26, 0
      %p136 = por %p134, %p135
      %s137 = ssub.s32 %s27, %s46
      %s138 = ssub.s32 %s28, %s42
      %s139 = sor.u32 %s137, %s138
      %p140 = scmp.eq.s32.totalorder %s139, 0
      %s142 = sadd.s32 %s141, 1
      %s143 = scalar_select %p140, %s141, %s142
      %p146 = pneg %p140
      %p147 = scmp.eq.s32.totalorder %s20, 1
      %p148 = por %p146, %p147
      %p149 = scmp.ne.s32.totalorder %s141, %s144
      %p150 = scmp.eq.s32.totalorder %s20, 0
      %p151 = por %p149, %p150
      %p152 = scmp.ne.s32.totalorder %s141, %s144
      %p153 = scmp.eq.s32.totalorder %s25, 1
      %p154 = por %p152, %p153
      %p155 = scmp.ne.s32.totalorder %s144, %s145
      %p156 = scmp.eq.s32.totalorder %s25, 0
      %p157 = por %p155, %p156
      %p158 = scmp.ne.s32.totalorder %s144, %s145
      %p159 = scmp.eq.s32.totalorder %s26, 1
      %p160 = por %p158, %p159
      %p162 = scmp.ne.s32.totalorder %s145, %s161
      %p163 = scmp.eq.s32.totalorder %s26, 0
      %p164 = por %p162, %p163
      %s165 = ssub.s32 %s27, %s46
      %s166 = ssub.s32 %s28, %s42
      %s167 = sor.u32 %s165, %s166
      %p168 = scmp.eq.s32.totalorder %s167, 0
      %s170 = sadd.s32 %s169, 1
      %s171 = scalar_select %p168, %s169, %s170
      %p174 = pneg %p168
      %p175 = scmp.eq.s32.totalorder %s20, 1
      %p176 = por %p174, %p175
      %p177 = scmp.ne.s32.totalorder %s169, %s172
      %p178 = scmp.eq.s32.totalorder %s20, 0
      %p179 = por %p177, %p178
      %p180 = scmp.ne.s32.totalorder %s169, %s172
      %p181 = scmp.eq.s32.totalorder %s25, 1
      %p182 = por %p180, %p181
      %p183 = scmp.ne.s32.totalorder %s172, %s173
      %p184 = scmp.eq.s32.totalorder %s25, 0
      %p185 = por %p183, %p184
      %p186 = scmp.ne.s32.totalorder %s172, %s173
      %p187 = scmp.eq.s32.totalorder %s26, 1
      %p188 = por %p186, %p187
      %p190 = scmp.ne.s32.totalorder %s173, %s189
      %p191 = scmp.eq.s32.totalorder %s26, 0
      %p192 = por %p190, %p191
      %s193 = ssub.s32 %s27, %s46
      %s194 = ssub.s32 %s28, %s42
      %s195 = sor.u32 %s193, %s194
      %p196 = scmp.eq.s32.totalorder %s195, 0
      %s198 = sadd.s32 %s197, 1
      %s199 = scalar_select %p196, %s197, %s198
      %p202 = pneg %p196
      %p203 = scmp.eq.s32.totalorder %s20, 1
      %p204 = por %p202, %p203
      %p205 = scmp.ne.s32.totalorder %s197, %s200
      %p206 = scmp.eq.s32.totalorder %s20, 0
      %p207 = por %p205, %p206
      %p208 = scmp.ne.s32.totalorder %s197, %s200
      %p209 = scmp.eq.s32.totalorder %s25, 1
      %p210 = por %p208, %p209
      %p211 = scmp.ne.s32.totalorder %s200, %s201
      %p212 = scmp.eq.s32.totalorder %s25, 0
      %p213 = por %p211, %p212
      %p214 = scmp.ne.s32.totalorder %s200, %s201
      %p215 = scmp.eq.s32.totalorder %s26, 1
      %p216 = por %p214, %p215
      %p218 = scmp.ne.s32.totalorder %s201, %s217
      %p219 = scmp.eq.s32.totalorder %s26, 0
      %p220 = por %p218, %p219
      %s221 = ssub.s32 %s27, %s46
      %s222 = ssub.s32 %s28, %s42
      %s223 = sor.u32 %s221, %s222
      %p224 = scmp.eq.s32.totalorder %s223, 0
      %s226 = sadd.s32 %s225, 1
      %s227 = scalar_select %p224, %s225, %s226
      %p230 = pneg %p224
      %p231 = scmp.eq.s32.totalorder %s20, 1
      %p232 = por %p230, %p231
      %p233 = scmp.ne.s32.totalorder %s225, %s228
      %p234 = scmp.eq.s32.totalorder %s20, 0
      %p235 = por %p233, %p234
      %p236 = scmp.ne.s32.totalorder %s225, %s228
      %p237 = scmp.eq.s32.totalorder %s25, 1
      %p238 = por %p236, %p237
      %p239 = scmp.ne.s32.totalorder %s228, %s229
      %p240 = scmp.eq.s32.totalorder %s25, 0
      %p241 = por %p239, %p240
      %p242 = scmp.ne.s32.totalorder %s228, %s229
      %p243 = scmp.eq.s32.totalorder %s26, 1
      %p244 = por %p242, %p243
      %p246 = scmp.ne.s32.totalorder %s229, %s245
      %p247 = scmp.eq.s32.totalorder %s26, 0
      %p248 = por %p246, %p247
      %s249 = ssub.s32 %s27, %s46
      %s250 = ssub.s32 %s28, %s42
      %s251 = sor.u32 %s249, %s250
      %p252 = scmp.eq.s32.totalorder %s251, 0
      %s254 = sadd.s32 %s253, 1
      %s255 = scalar_select %p252, %s253, %s254
      %p258 = pneg %p252
      %p259 = scmp.eq.s32.totalorder %s20, 1
      %p260 = por %p258, %p259
      %p261 = scmp.ne.s32.totalorder %s253, %s256
      %p262 = scmp.eq.s32.totalorder %s20, 0
      %p263 = por %p261, %p262
      %p264 = scmp.ne.s32.totalorder %s253, %s256
      %p265 = scmp.eq.s32.totalorder %s25, 1
      %p266 = por %p264, %p265
      %p267 = scmp.ne.s32.totalorder %s256, %s257
      %p268 = scmp.eq.s32.totalorder %s25, 0
      %p269 = por %p267, %p268
      %p270 = scmp.ne.s32.totalorder %s256, %s257
      %p271 = scmp.eq.s32.totalorder %s26, 1
      %p272 = por %p270, %p271
      %p274 = scmp.ne.s32.totalorder %s257, %s273
      %p275 = scmp.eq.s32.totalorder %s26, 0
      %p276 = por %p274, %p275
      %p277 = scmp.le.s32.totalorder 1, %s20
      %p278 = scmp.lt.s32.totalorder %s20, 3
      %p279 = pnand %p277, %p278
      %p280 = pneg %p279
      // Predicated region
      $region9: #{tpu_custom_call.1} parent=5 // pred_check
        _
      $region10: #{tpu_custom_call.1} parent=5 // pred_check_branch
        %282 = sbr.rel (%p279) target = $region12
      $region11: #{tpu_custom_call.1} parent=5 // pred_region
        %s283 = ssub.s32 %s20, 1
      $region12: #{tpu_custom_call.1} parent=5 // pred_fallthru
        _
      %p284 = scmp.lt.s32.totalorder %s20, 2
      // Predicated region
      $region13: #{tpu_custom_call.1} parent=5 // pred_check
        %p285 = pneg %p284
      $region14: #{tpu_custom_call.1} parent=5 // pred_check_branch
        %287 = sbr.rel (%p285) target = $region16
      $region15: #{tpu_custom_call.1} parent=5 // pred_region
        // Predicated region
        $region17: #{tpu_custom_call.1} parent=15 // pred_check
          %p288 = pneg %p63
        $region18: #{tpu_custom_call.1} parent=15 // pred_check_branch
          %290 = sbr.rel (%p288) target = $region20
        $region19: #{tpu_custom_call.1} parent=15 // pred_region
          %s291 = sand.u32 %s53, 1
          %s292 = scalar_lea.sflag [#allocation3], %s291
          %s293 = sand.u32 %s53, 1
          %s294 = smul.addr %s293, 8
          %s295 = scalar_lea.vmem [#allocation2], %s294
          %s296 = sadd.s32 %s28, %s29
          %s297 = smul.u32 2, %s296
          %s299 = ssub.s32 128, 128
          %300 = vsyncadd %s292, %s299
          %s301 = smul.addr %s27, 2
          %s302 = sadd.s32 %s297, %s301
          %s303 = smul.addr %s302, 64
          %s304 = scalar_lea.hbm %s0, %s303
          %s306 = sshll.u32 %s295, 4
          %s307 = int_to_ptr.vmem [resolvable:$true] %s306
          %309 = dma.hbm_to_vmem [thread:$0]  %s304, 128, %s307, %s292
        $region20: #{tpu_custom_call.1} parent=15 // pred_fallthru
          _
        // Predicated region
        $region21: #{tpu_custom_call.1} parent=15 // pred_check
          %p310 = pneg %p93
        $region22: #{tpu_custom_call.1} parent=15 // pred_check_branch
          %312 = sbr.rel (%p310) target = $region24
        $region23: #{tpu_custom_call.1} parent=15 // pred_region
          %s313 = sand.u32 %s83, 1
          %s314 = scalar_lea.sflag [#allocation5], %s313
          %s315 = sand.u32 %s83, 1
          %s316 = smul.addr %s315, 2
          %s317 = scalar_lea.vmem [#allocation4], %s316
          %s318 = sadd.s32 %s28, %s29
          %s319 = smul.u32 2, %s318
          %s321 = ssub.s32 32, 32
          %322 = vsyncadd %s314, %s321
          %s323 = smul.addr %s27, 2
          %s324 = sadd.s32 %s319, %s323
          %s325 = smul.addr %s324, 16
          %s326 = scalar_lea.hbm %s1, %s325
          %s328 = sshll.u32 %s317, 4
          %s329 = int_to_ptr.vmem [resolvable:$true] %s328
          %331 = dma.hbm_to_vmem [thread:$0]  %s326, 32, %s329, %s314
        $region24: #{tpu_custom_call.1} parent=15 // pred_fallthru
          _
        // Predicated region
        $region25: #{tpu_custom_call.1} parent=15 // pred_check
          %p332 = pneg %p123
        $region26: #{tpu_custom_call.1} parent=15 // pred_check_branch
          %334 = sbr.rel (%p332) target = $region28
        $region27: #{tpu_custom_call.1} parent=15 // pred_region
          %s335 = sadd.s32 %s28, %s29
          %s336 = smul.u32 2, %s335
          %p337 = scmp.lt.s32.totalorder %s27, 1
          %s338 = scalar_select %p337, %s27, 1
          %p339 = scmp.lt.s32.totalorder %s336, 1
          %s340 = scalar_select %p339, %s336, 1
          %s341 = smul.addr %s338, 2
          %s342 = sadd.s32 %s340, %s341
          %s343 = scalar_lea.vmem %s2, %s342
          %s344 = sadd.s32 %s28, %s29
          %s345 = smul.u32 2, %s344
        $region28: #{tpu_custom_call.1} parent=15 // pred_fallthru
          _
      $region16: #{tpu_custom_call.1} parent=5 // pred_fallthru
        _
      %p346 = scmp.le.s32.totalorder 1, %s20
      %p347 = scmp.lt.s32.totalorder %s20, 3
      %p348 = pnand %p346, %p347
      %p349 = pneg %p348
      // Predicated region
      $region29: #{tpu_custom_call.1} parent=5 // pred_check
        _
      $region30: #{tpu_custom_call.1} parent=5 // pred_check_branch
        %351 = sbr.rel (%p348) target = $region32
      $region31: #{tpu_custom_call.1} parent=5 // pred_region
        %s352 = ssub.s32 %s20, 1
        %s353 = sand.u32 %s56, 1
        %s354 = scalar_lea.sflag [#allocation3], %s353
        %s355 = sand.u32 %s56, 1
        %s356 = smul.addr %s355, 8
        %s357 = scalar_lea.vmem [#allocation2], %s356
        // Predicated region
        $region33: #{tpu_custom_call.1} parent=31 // pred_check
          %p358 = pneg %p69
        $region34: #{tpu_custom_call.1} parent=31 // pred_check_branch
          %360 = sbr.rel (%p358) target = $region36
        $region35: #{tpu_custom_call.1} parent=31 // pred_region
          %361 = dma.done %s354, 128
        $region36: #{tpu_custom_call.1} parent=31 // pred_fallthru
          _
        %s362 = sand.u32 %s86, 1
        %s363 = scalar_lea.sflag [#allocation5], %s362
        %s364 = sand.u32 %s86, 1
        %s365 = smul.addr %s364, 2
        %s366 = scalar_lea.vmem [#allocation4], %s365
        // Predicated region
        $region37: #{tpu_custom_call.1} parent=31 // pred_check
          %p367 = pneg %p99
        $region38: #{tpu_custom_call.1} parent=31 // pred_check_branch
          %369 = sbr.rel (%p367) target = $region40
        $region39: #{tpu_custom_call.1} parent=31 // pred_region
          %370 = dma.done %s363, 32
        $region40: #{tpu_custom_call.1} parent=31 // pred_fallthru
          _
        %s371 = sand.u32 %s56, 1
        %s372 = scalar_lea.sflag [#allocation3], %s371
        %s373 = sand.u32 %s56, 1
        %s374 = smul.addr %s373, 8
        %s375 = scalar_lea.vmem [#allocation2], %s374
        %p376 = pneg %p69
        %p377 = pneg %p66
        %s378 = sand.u32 %s86, 1
        %s379 = scalar_lea.sflag [#allocation5], %s378
        %s380 = sand.u32 %s86, 1
        %s381 = smul.addr %s380, 2
        %s382 = scalar_lea.vmem [#allocation4], %s381
        %p383 = pneg %p99
        %p384 = pneg %p96
        %s385 = sadd.s32 %s31, %s32
        %s386 = smul.u32 2, %s385
        %p387 = scmp.lt.s32.totalorder %s30, 1
        %s388 = scalar_select %p387, %s30, 1
        %p389 = scmp.lt.s32.totalorder %s386, 1
        %s390 = scalar_select %p389, %s386, 1
        %s391 = smul.addr %s388, 2
        %s392 = sadd.s32 %s390, %s391
        %s393 = scalar_lea.vmem %s2, %s392
        %p394 = pneg %p129
        %p395 = pneg %p126
        %p396 = pneg %p157
        %p397 = pneg %p154
        %p398 = scmp.lt.s32.totalorder %s30, 1
        %s399 = scalar_select %p398, %s30, 1
        %p400 = scmp.lt.s32.totalorder %s31, 0
        %s401 = scalar_select %p400, %s31, 0
        %s402 = sadd.s32 %s401, %s399
        %s403 = smul.addr %s402, 4
        %s404 = scalar_lea.vmem %s3, %s403
        %p405 = pneg %p185
        %p406 = pneg %p182
        %p407 = scmp.lt.s32.totalorder %s30, 1
        %s408 = scalar_select %p407, %s30, 1
        %p409 = scmp.lt.s32.totalorder %s31, 0
        %s410 = scalar_select %p409, %s31, 0
        %s411 = sadd.s32 %s410, %s408
        %s412 = scalar_lea.vmem %s4, %s411
        %p413 = pneg %p213
        %p414 = pneg %p210
        %p415 = scmp.lt.s32.totalorder %s30, 1
        %s416 = scalar_select %p415, %s30, 1
        %p417 = scmp.lt.s32.totalorder %s31, 0
        %s418 = scalar_select %p417, %s31, 0
        %s419 = sadd.s32 %s418, %s416
        %s420 = smul.addr %s419, 4
        %s421 = scalar_lea.vmem %s5, %s420
        %p422 = pneg %p241
        %p423 = pneg %p238
        %p424 = scmp.lt.s32.totalorder %s30, 1
        %s425 = scalar_select %p424, %s30, 1
        %p426 = scmp.lt.s32.totalorder %s31, 0
        %s427 = scalar_select %p426, %s31, 0
        %s428 = sadd.s32 %s427, %s425
        %s429 = smul.addr %s428, 4
        %s430 = scalar_lea.vmem %s6, %s429
        %p431 = pneg %p269
        %p432 = pneg %p266
        %p433 = scmp.lt.s32.totalorder %s30, 1
        %s434 = scalar_select %p433, %s30, 1
        %p435 = scmp.lt.s32.totalorder %s31, 0
        %s436 = scalar_select %p435, %s31, 0
        %s437 = sadd.s32 %s436, %s434
        %s438 = scalar_lea.vmem %s7, %s437
        %s439 = sadd.s32 %s31, %s32
        %s440 = smul.u32 2, %s439
        %s441 = sadd.s32 %s31, %s32
        %s442 = smul.u32 2, %s441
        %s443 = sadd.s32 %s31, %s32
        %s444 = smul.u32 2, %s443
        %p445 = scmp.lt.s32.totalorder %s30, 1
        %s446 = scalar_select %p445, %s30, 1
        %p447 = scmp.lt.s32.totalorder %s444, 1
        %s448 = scalar_select %p447, %s444, 1
        %s449 = smul.addr %s446, 2
        %s450 = sadd.s32 %s448, %s449
        %s451 = scalar_lea.vmem %s2, %s450
        %s452 = sadd.s32 %s31, %s32
        %s453 = smul.u32 2, %s452
        %p454 = scmp.lt.s32.totalorder %s30, 1
        %s455 = scalar_select %p454, %s30, 1
        %p456 = scmp.lt.s32.totalorder %s31, 0
        %s457 = scalar_select %p456, %s31, 0
        %s458 = sadd.s32 %s457, %s455
        %s459 = smul.addr %s458, 4
        %s460 = scalar_lea.vmem %s3, %s459
        %p461 = scmp.lt.s32.totalorder %s30, 1
        %s462 = scalar_select %p461, %s30, 1
        %p463 = scmp.lt.s32.totalorder %s31, 0
        %s464 = scalar_select %p463, %s31, 0
        %s465 = sadd.s32 %s464, %s462
        %s466 = scalar_lea.vmem %s4, %s465
        %p467 = scmp.lt.s32.totalorder %s30, 1
        %s468 = scalar_select %p467, %s30, 1
        %p469 = scmp.lt.s32.totalorder %s31, 0
        %s470 = scalar_select %p469, %s31, 0
        %s471 = sadd.s32 %s470, %s468
        %s472 = smul.addr %s471, 4
        %s473 = scalar_lea.vmem %s5, %s472
        %p474 = scmp.lt.s32.totalorder %s30, 1
        %s475 = scalar_select %p474, %s30, 1
        %p476 = scmp.lt.s32.totalorder %s31, 0
        %s477 = scalar_select %p476, %s31, 0
        %s478 = sadd.s32 %s477, %s475
        %s479 = smul.addr %s478, 4
        %s480 = scalar_lea.vmem %s6, %s479
        %p481 = scmp.lt.s32.totalorder %s30, 1
        %s482 = scalar_select %p481, %s30, 1
        %p483 = scmp.lt.s32.totalorder %s31, 0
        %s484 = scalar_select %p483, %s31, 0
        %s485 = sadd.s32 %s484, %s482
        %s486 = scalar_lea.vmem %s7, %s485
        %p487 = scmp.eq.s32.totalorder %s32, 0
        // Predicated region
        $region41: #{tpu_custom_call.1} parent=31 // pred_check
          %p488 = pneg %p487
        $region42: #{tpu_custom_call.1} parent=31 // pred_check_branch
          %490 = sbr.rel (%p488) target = $region44
        $region43: #{tpu_custom_call.1} parent=31 // pred_region
          %vm491 = vcmask 3072
          %492 = vst.msk [vmem:[%s460] sm:$0xf] %vm491, 0.0
          %vm493 = vcmask 0
          %494 = vst.msk [vmem:[%s466] sm:$0x1] %vm493, 0.0
          %495 = vst.msk [vmem:[%s473] sm:$0xf] %vm491, 0.0
          %496 = vst.msk [vmem:[%s480] sm:$0xf] %vm491, 0.0
          %497 = vst.msk [vmem:[%s486] sm:$0x1] %vm493, 0.0
        $region44: #{tpu_custom_call.1} parent=31 // pred_fallthru
          _
        %v498 = vld [vmem:[%s357] sm:$0xff]
        %v499 = vld [vmem:[%s366] sm:$0x3]
        %vm500 = vcmp.eq.s32.totalorder %v499, 2
        %v501 = vld [vmem:[%s451] sm:$0x3]
        %vm502 = vcmp.eq.s32.totalorder %v501, 1
        %v503 = vsel %vm500, 1, 0
        %v504 = vlaneseq
        %v505 = vshrl.u32 %v504, 7
        %v506 = vsub.s32 0, %v505
        %v507 = vrot.slane %v503, %v506
        %v508 = vlaneseq
        %v509 = vshrl.u32 %v508, 7
        %v510 = vsub.s32 1, %v509
        %v511 = vrot.slane %v503, %v510
        %vm512 = vcmp.eq.s32.totalorder %v507, 1
        %vm513 = vcmp.eq.s32.totalorder %v511, 1
        %v515 = vcombine.high %v498, %v498
        %v517 = vsel %vm512, %v498, 0.0
        %v518 = vsel %vm513, %v515, 0.0
        %v519 = vld [vmem:[%s460] sm:$0xf]
        %vm520 = vcmask 1043456
        %v521 = vsel %vm520, %v517, 0.0
        %v522 = vsel %vm520, %v518, 0.0
        %v523 = vadd.f32 %v521, %v522
        %524 = vadd.xlane.f32.xlu0 %v523
        %v525 = vpop.xlane.xlu0 %524
        %v526 = vadd.f32 %v519, %v525
        %vm527 = vcmask 3072
        %528 = vst.msk [vmem:[%s460] sm:$0xf] %vm527, %v526
        %v529 = vld [vmem:[%s466] sm:$0x1]
        %v530 = vcvt.s32.f32 %v503
        %v532 = vlaneseq
        %v533 = vshrl.u32 %v532, 7
        %v534 = vsub.s32 0, %v533
        %v535 = vrot.slane %v530, %v534
        %v536 = vlaneseq
        %v537 = vshrl.u32 %v536, 7
        %v538 = vsub.s32 1, %v537
        %v539 = vrot.slane %v530, %v538
        %vm542 = vcmask 1040384
        %v543 = vsel %vm542, %v535, 0.0
        %v544 = vsel %vm542, %v539, 0.0
        %v545 = vadd.f32 %v543, %v544
        %546 = vadd.xlane.f32.xlu0 %v545
        %v547 = vpop.xlane.xlu0 %546
        %v548 = vadd.f32 %v529, %v547
        %vm549 = vcmask 0
        %550 = vst.msk [vmem:[%s466] sm:$0x1] %vm549, %v548
        %v551 = vsel %vm502, 1, 0
        %v552 = vlaneseq
        %v553 = vshrl.u32 %v552, 7
        %v554 = vsub.s32 0, %v553
        %v555 = vrot.slane %v551, %v554
        %v556 = vlaneseq
        %v557 = vshrl.u32 %v556, 7
        %v558 = vsub.s32 1, %v557
        %v559 = vrot.slane %v551, %v558
        %vm560 = vcmp.eq.s32.totalorder %v555, 1
        %vm561 = vcmp.eq.s32.totalorder %v559, 1
        %v562 = vsel %vm560, %v498, 0.0
        %v563 = vsel %vm561, %v515, 0.0
        %v564 = vld [vmem:[%s473] sm:$0xf]
        %v565 = vsel %vm520, %v562, 0.0
        %v566 = vsel %vm520, %v563, 0.0
        %v567 = vadd.f32 %v565, %v566
        %568 = vadd.xlane.f32.xlu0 %v567
        %v569 = vpop.xlane.xlu0 %568
        %v570 = vadd.f32 %v564, %v569
        %571 = vst.msk [vmem:[%s473] sm:$0xf] %vm527, %v570
        %v572 = vld [vmem:[%s480] sm:$0xf]
        %v573 = vmul.f32 %v562, %v562
        %v574 = vmul.f32 %v563, %v563
        %v575 = vsel %vm520, %v573, 0.0
        %v576 = vsel %vm520, %v574, 0.0
        %v577 = vadd.f32 %v575, %v576
        %578 = vadd.xlane.f32.xlu0 %v577
        %v579 = vpop.xlane.xlu0 %578
        %v580 = vadd.f32 %v572, %v579
        %581 = vst.msk [vmem:[%s480] sm:$0xf] %vm527, %v580
        %v582 = vld [vmem:[%s486] sm:$0x1]
        %v583 = vcvt.s32.f32 %v551
        %v585 = vlaneseq
        %v586 = vshrl.u32 %v585, 7
        %v587 = vsub.s32 0, %v586
        %v588 = vrot.slane %v583, %v587
        %v589 = vlaneseq
        %v590 = vshrl.u32 %v589, 7
        %v591 = vsub.s32 1, %v590
        %v592 = vrot.slane %v583, %v591
        %v595 = vsel %vm542, %v588, 0.0
        %v596 = vsel %vm542, %v592, 0.0
        %v597 = vadd.f32 %v595, %v596
        %598 = vadd.xlane.f32.xlu0 %v597
        %v599 = vpop.xlane.xlu0 %598
        %v600 = vadd.f32 %v582, %v599
        %601 = vst.msk [vmem:[%s486] sm:$0x1] %vm549, %v600
        %p602 = scmp.lt.s32.totalorder %s30, 1
        %s603 = scalar_select %p602, %s30, 1
        %p604 = scmp.lt.s32.totalorder %s31, 0
        %s605 = scalar_select %p604, %s31, 0
        %s606 = sadd.s32 %s605, %s603
        %s607 = smul.addr %s606, 4
        %s608 = scalar_lea.vmem %s3, %s607
        %p609 = scmp.lt.s32.totalorder %s30, 1
        %s610 = scalar_select %p609, %s30, 1
        %p611 = scmp.lt.s32.totalorder %s31, 0
        %s612 = scalar_select %p611, %s31, 0
        %s613 = sadd.s32 %s612, %s610
        %s614 = scalar_lea.vmem %s4, %s613
        %p615 = scmp.lt.s32.totalorder %s30, 1
        %s616 = scalar_select %p615, %s30, 1
        %p617 = scmp.lt.s32.totalorder %s31, 0
        %s618 = scalar_select %p617, %s31, 0
        %s619 = sadd.s32 %s618, %s616
        %s620 = smul.addr %s619, 4
        %s621 = scalar_lea.vmem %s5, %s620
        %p622 = scmp.lt.s32.totalorder %s30, 1
        %s623 = scalar_select %p622, %s30, 1
        %p624 = scmp.lt.s32.totalorder %s31, 0
        %s625 = scalar_select %p624, %s31, 0
        %s626 = sadd.s32 %s625, %s623
        %s627 = smul.addr %s626, 4
        %s628 = scalar_lea.vmem %s6, %s627
        %p629 = scmp.lt.s32.totalorder %s30, 1
        %s630 = scalar_select %p629, %s30, 1
        %p631 = scmp.lt.s32.totalorder %s31, 0
        %s632 = scalar_select %p631, %s31, 0
        %s633 = sadd.s32 %s632, %s630
        %s634 = scalar_lea.vmem %s7, %s633
        // Predicated region
        $region45: #{tpu_custom_call.1} parent=31 // pred_check
          %p635 = pneg %p154
        $region46: #{tpu_custom_call.1} parent=31 // pred_check_branch
          %637 = sbr.rel (%p635) target = $region48
        $region47: #{tpu_custom_call.1} parent=31 // pred_region
          _
        $region48: #{tpu_custom_call.1} parent=31 // pred_fallthru
          _
        // Predicated region
        $region49: #{tpu_custom_call.1} parent=31 // pred_check
          %p638 = pneg %p182
        $region50: #{tpu_custom_call.1} parent=31 // pred_check_branch
          %640 = sbr.rel (%p638) target = $region52
        $region51: #{tpu_custom_call.1} parent=31 // pred_region
          _
        $region52: #{tpu_custom_call.1} parent=31 // pred_fallthru
          _
        // Predicated region
        $region53: #{tpu_custom_call.1} parent=31 // pred_check
          %p641 = pneg %p210
        $region54: #{tpu_custom_call.1} parent=31 // pred_check_branch
          %643 = sbr.rel (%p641) target = $region56
        $region55: #{tpu_custom_call.1} parent=31 // pred_region
          _
        $region56: #{tpu_custom_call.1} parent=31 // pred_fallthru
          _
        // Predicated region
        $region57: #{tpu_custom_call.1} parent=31 // pred_check
          %p644 = pneg %p238
        $region58: #{tpu_custom_call.1} parent=31 // pred_check_branch
          %646 = sbr.rel (%p644) target = $region60
        $region59: #{tpu_custom_call.1} parent=31 // pred_region
          _
        $region60: #{tpu_custom_call.1} parent=31 // pred_fallthru
          _
        // Predicated region
        $region61: #{tpu_custom_call.1} parent=31 // pred_check
          %p647 = pneg %p266
        $region62: #{tpu_custom_call.1} parent=31 // pred_check_branch
          %649 = sbr.rel (%p647) target = $region64
        $region63: #{tpu_custom_call.1} parent=31 // pred_region
          _
        $region64: #{tpu_custom_call.1} parent=31 // pred_fallthru
          _
      $region32: #{tpu_custom_call.1} parent=5 // pred_fallthru
        _
      %p650 = scmp.le.s32.totalorder 2, %s20
      // Predicated region
      $region65: #{tpu_custom_call.1} parent=5 // pred_check
        %p651 = pneg %p650
      $region66: #{tpu_custom_call.1} parent=5 // pred_check_branch
        %653 = sbr.rel (%p651) target = $region68
      $region67: #{tpu_custom_call.1} parent=5 // pred_region
        %s654 = ssub.s32 %s20, 2
        // Predicated region
        $region69: #{tpu_custom_call.1} parent=67 // pred_check
          %p655 = pneg %p160
        $region70: #{tpu_custom_call.1} parent=67 // pred_check_branch
          %657 = sbr.rel (%p655) target = $region72
        $region71: #{tpu_custom_call.1} parent=67 // pred_region
          %p658 = scmp.lt.s32.totalorder %s33, 1
          %s659 = scalar_select %p658, %s33, 1
          %p660 = scmp.lt.s32.totalorder %s34, 0
          %s661 = scalar_select %p660, %s34, 0
          %s662 = sadd.s32 %s661, %s659
          %s663 = smul.addr %s662, 4
          %s664 = scalar_lea.vmem %s3, %s663
        $region72: #{tpu_custom_call.1} parent=67 // pred_fallthru
          _
        // Predicated region
        $region73: #{tpu_custom_call.1} parent=67 // pred_check
          %p665 = pneg %p188
        $region74: #{tpu_custom_call.1} parent=67 // pred_check_branch
          %667 = sbr.rel (%p665) target = $region76
        $region75: #{tpu_custom_call.1} parent=67 // pred_region
          %p668 = scmp.lt.s32.totalorder %s33, 1
          %s669 = scalar_select %p668, %s33, 1
          %p670 = scmp.lt.s32.totalorder %s34, 0
          %s671 = scalar_select %p670, %s34, 0
          %s672 = sadd.s32 %s671, %s669
          %s673 = scalar_lea.vmem %s4, %s672
        $region76: #{tpu_custom_call.1} parent=67 // pred_fallthru
          _
        // Predicated region
        $region77: #{tpu_custom_call.1} parent=67 // pred_check
          %p674 = pneg %p216
        $region78: #{tpu_custom_call.1} parent=67 // pred_check_branch
          %676 = sbr.rel (%p674) target = $region80
        $region79: #{tpu_custom_call.1} parent=67 // pred_region
          %p677 = scmp.lt.s32.totalorder %s33, 1
          %s678 = scalar_select %p677, %s33, 1
          %p679 = scmp.lt.s32.totalorder %s34, 0
          %s680 = scalar_select %p679, %s34, 0
          %s681 = sadd.s32 %s680, %s678
          %s682 = smul.addr %s681, 4
          %s683 = scalar_lea.vmem %s5, %s682
        $region80: #{tpu_custom_call.1} parent=67 // pred_fallthru
          _
        // Predicated region
        $region81: #{tpu_custom_call.1} parent=67 // pred_check
          %p684 = pneg %p244
        $region82: #{tpu_custom_call.1} parent=67 // pred_check_branch
          %686 = sbr.rel (%p684) target = $region84
        $region83: #{tpu_custom_call.1} parent=67 // pred_region
          %p687 = scmp.lt.s32.totalorder %s33, 1
          %s688 = scalar_select %p687, %s33, 1
          %p689 = scmp.lt.s32.totalorder %s34, 0
          %s690 = scalar_select %p689, %s34, 0
          %s691 = sadd.s32 %s690, %s688
          %s692 = smul.addr %s691, 4
          %s693 = scalar_lea.vmem %s6, %s692
        $region84: #{tpu_custom_call.1} parent=67 // pred_fallthru
          _
        // Predicated region
        $region85: #{tpu_custom_call.1} parent=67 // pred_check
          %p694 = pneg %p272
        $region86: #{tpu_custom_call.1} parent=67 // pred_check_branch
          %696 = sbr.rel (%p694) target = $region88
        $region87: #{tpu_custom_call.1} parent=67 // pred_region
          %p697 = scmp.lt.s32.totalorder %s33, 1
          %s698 = scalar_select %p697, %s33, 1
          %p699 = scmp.lt.s32.totalorder %s34, 0
          %s700 = scalar_select %p699, %s34, 0
          %s701 = sadd.s32 %s700, %s698
          %s702 = scalar_lea.vmem %s7, %s701
        $region88: #{tpu_custom_call.1} parent=67 // pred_fallthru
          _
      $region68: #{tpu_custom_call.1} parent=5 // pred_fallthru
        _
    $region6: #{tpu_custom_call.1} parent=1 // loop_footer
      %s24 = sadd.s32 1, %s20
    $region7: #{tpu_custom_call.1} parent=1 // loop_footer_branch
      %19 = sbr.rel target = $region3
    $region8: #{tpu_custom_call.1} parent=1 // loop_exit
      _
    %703 = vsyncpa [#allocation3], 1
    %s704 = scalar_lea.sflag [#allocation3], 1
    %705 = vsyncpa %s704, 1
    %706 = vsyncpa [#allocation5], 1
    %s707 = scalar_lea.sflag [#allocation5], 1
    %708 = vsyncpa %s707, 1

</llo_original>
